<compile_context>
chip_gen: v7x
topology: tpu7x:2x2x1
jax: 0.10.0
libtpu: 0.0.40
codegen_flags: <defaults>
</compile_context>

<pallas_src>
import math

import numpy as np
import jax
import jax.numpy as jnp
from jax import lax
from jax.experimental import pallas as pl
from jax.experimental.pallas import tpu as pltpu


# TODO(synk): get_padd was not provided with the module; using the common
# "pad so the strided windows cover the input" definition (yields 0 when
# (L - k) % s == 0, which is the configuration exercised below).
def get_padd(L, k, s):
    rem = (L - k) % s
    if rem == 0:
        return 0
    return (s - rem + 1) // 2


def _round_up(x, m):
    return (x + m - 1) // m * m


# ----------------------------- Pallas kernel --------------------------------
def _encoder2d_kernel(x_ref, w1_ref, b1_ref, w2_ref, b2_ref, out_ref):
    # x_ref: (TB, E)    w1_ref: (E, P*C)   b1_ref: (1, P*C)
    # w2_ref: (P*C, Lp) b2_ref: (1, Lp)    out_ref: (TB, Lp)   [Lp = 128-lane padded]
    w_dtype = w1_ref.dtype
    x = x_ref[...].astype(w_dtype)                       # no-op for f32 weights
    h = jnp.dot(x, w1_ref[...], preferred_element_type=jnp.float32)
    h = jnp.maximum(h + b1_ref[...], 0.0)                # conv bias + ReLU (VPU, f32)
    out_ref[...] = (
        jnp.dot(h.astype(w_dtype), w2_ref[...], preferred_element_type=jnp.float32)
        + b2_ref[...]
    )


# --------------------- one-time parameter preparation -----------------------
def prepare_encoder_params(params, cfg, weight_dtype=jnp.float32):
    """Hoisted out of the forward path: fuse the conv into a dense
    (embed_dim, P*C) weight, permute the linear weight to (nx, ny, C) order,
    and zero-pad the output dimension to 128 lanes.  Done once on host."""
    x_dim, y_dim = cfg["x_dim"], cfg["y_dim"]
    kx, ky = cfg["kernel_size"]
    sx, sy = cfg["stride"]
    px, py = cfg["padding"]
    nx, ny = cfg["nx"], cfg["ny"]
    C = cfg["hidden_ch"]
    L = cfg["latent_dim"]
    E = x_dim * y_dim
    P = nx * ny
    K = kx * ky
    Lp = _round_up(L, 128)                               # lane-dense output width

    conv_w = np.asarray(params["conv_w"], np.float32).reshape(C, K)   # (C, kx*ky)
    conv_b = np.asarray(params["conv_b"], np.float32)
    lin_w = np.asarray(params["lin_w"], np.float32)
    lin_b = np.asarray(params["lin_b"], np.float32)

    # M[e, p, k] = 1 iff output patch p at kernel offset k reads (unpadded) pixel e.
    # Padding pixels contribute nothing (zeros), so the conv becomes x @ W1.
    M = np.zeros((E, P, K), np.float32)
    for ix in range(nx):
        for a in range(kx):
            r = ix * sx - px + a
            if r < 0 or r >= x_dim:
                continue
            for iy in range(ny):
                for b in range(ky):
                    c = iy * sy - py + b
                    if c < 0 or c >= y_dim:
                        continue
                    M[r * y_dim + c, ix * ny + iy, a * ky + b] += 1.0

    w1 = np.einsum("epk,ck->epc", M, conv_w).reshape(E, P * C)        # (E, P*C)
    b1 = np.tile(conv_b, P).reshape(1, P * C)                         # b1[p*C+c] = conv_b[c]

    # PyTorch flattens (B, C, nx, ny) channel-major; our hidden activation is
    # flattened as (nx, ny, C), so permute lin_w rows to match, then zero-pad the
    # output dimension to Lp lanes so the second matmul / store is lane-dense.
    w2 = lin_w.reshape(L, C, nx, ny).transpose(2, 3, 1, 0).reshape(P * C, L)
    w2_p = np.zeros((P * C, Lp), np.float32)
    w2_p[:, :L] = w2
    b2_p = np.zeros((1, Lp), np.float32)
    b2_p[0, :L] = lin_b

    return dict(
        w1=jnp.asarray(w1, weight_dtype),
        b1=jnp.asarray(b1, jnp.float32),
        w2=jnp.asarray(w2_p, weight_dtype),
        b2=jnp.asarray(b2_p, jnp.float32),
    )


# ------------------------------ forward --------------------------------------
def encoder_2d_forward(x, fused, *, latent_dim, block_b=1024):
    """x: (B, embed_dim) float32.  fused: output of prepare_encoder_params.
    Returns (B, latent_dim) float32.  Single pallas_call, batch-parallel grid."""
    w1, b1, w2, b2 = fused["w1"], fused["b1"], fused["w2"], fused["b2"]
    B, E = x.shape
    PC = w1.shape[1]
    Lp = w2.shape[1]                                      # 128-lane padded output

    # Batch tile: multiple of 8 sublanes, capped at block_b, and split so that
    # the grid has >= 2 parallel blocks once B is large enough (v7x megacore).
    tb = min(block_b, max(8, _round_up(pl.cdiv(B, 2), 8)))
    n_blocks = pl.cdiv(B, tb)
    Bp = n_blocks * tb
    if Bp != B:
        x = jnp.pad(x, ((0, Bp - B), (0, 0)))             # single pad of the tiny input

    itemsize = jnp.dtype(w1.dtype).itemsize
    flops = 2 * Bp * E * PC + 2 * Bp * PC * Lp
    bytes_accessed = (
        4 * Bp * E + itemsize * (E * PC + PC * Lp) + 4 * (PC + Lp) + 4 * Bp * Lp
    )

    out = pl.pallas_call(
        _encoder2d_kernel,
        out_shape=jax.ShapeDtypeStruct((Bp, Lp), jnp.float32),
        grid=(n_blocks,),
        in_specs=[
            pl.BlockSpec((tb, E), lambda i: (i, 0)),      # x: tiled over batch
            pl.BlockSpec((E, PC), lambda i: (0, 0)),      # W1: resident
            pl.BlockSpec((1, PC), lambda i: (0, 0)),      # b1: resident
            pl.BlockSpec((PC, Lp), lambda i: (0, 0)),     # W2: resident (lane-padded)
            pl.BlockSpec((1, Lp), lambda i: (0, 0)),      # b2: resident (lane-padded)
        ],
        out_specs=pl.BlockSpec((tb, Lp), lambda i: (i, 0)),
        compiler_params=pltpu.CompilerParams(
            dimension_semantics=("parallel",),
            vmem_limit_bytes=32 * 1024 * 1024,            # covers v5e's 16 MiB default
        ),
        cost_estimate=pl.CostEstimate(
            flops=flops, transcendentals=0, bytes_accessed=bytes_accessed
        ),
    )(x, w1, b1, w2, b2)

    # Single slice back to the true batch rows and the true latent width.
    return out[:B, :latent_dim]


# ------------------------------ reference -----------------------------------
def encoder_2d_reference(x, params, cfg):
    B = x.shape[0]
    img = x.reshape(B, 1, cfg["x_dim"], cfg["y_dim"])
    conv = lax.conv_general_dilated(
        img,
        params["conv_w"],
        window_strides=tuple(cfg["stride"]),
        padding=[(cfg["padding"][0], cfg["padding"][0]),
                 (cfg["padding"][1], cfg["padding"][1])],
        dimension_numbers=("NCHW", "OIHW", "NCHW"),
        precision=lax.Precision.HIGHEST,
    ) + params["conv_b"].reshape(1, -1, 1, 1)
    h = jnp.maximum(conv, 0.0).reshape(B, -1)
    return (
        jnp.dot(h, params["lin_w"].T, precision=lax.Precision.HIGHEST)
        + params["lin_b"]
    )


# ------------------------------- main ----------------------------------------
if __name__ == "__main__":
    # Small, self-consistent configuration (matches Encoder_2D's constructor math).
    x_dim = 16
    embed_dim = 256            # y_dim = embed_dim / x_dim = 16
    y_dim = embed_dim // x_dim
    kernel_size = [4, 4]
    stride = [4, 4]
    hidden_channels = 32
    latent_disc, latent_cont = 3, 2
    latent_dim = latent_disc + 2 * latent_cont

    padding = (get_padd(x_dim, kernel_size[0], stride[0]),
               get_padd(y_dim, kernel_size[1], stride[1]))
    nx = int((x_dim + 2 * padding[0] - kernel_size[0]) / stride[0] + 1)
    ny = int((y_dim + 2 * padding[1] - kernel_size[1]) / stride[1] + 1)
    N = nx * ny * hidden_channels

    cfg = dict(x_dim=x_dim, y_dim=y_dim, kernel_size=kernel_size, stride=stride,
               padding=padding, nx=nx, ny=ny, hidden_ch=hidden_channels,
               latent_dim=latent_dim)

    # Deterministic parameter init (PyTorch-style uniform bounds).
    key = jax.random.PRNGKey(0)
    k1, k2, k3, k4, k5 = jax.random.split(key, 5)
    fan_conv = 1 * kernel_size[0] * kernel_size[1]
    bc_bound = 1.0 / math.sqrt(fan_conv)
    bl_bound = 1.0 / math.sqrt(N)
    params = {
        "conv_w": jax.random.uniform(k1, (hidden_channels, 1, *kernel_size),
                                     jnp.float32, -bc_bound, bc_bound),
        "conv_b": jax.random.uniform(k2, (hidden_channels,), jnp.float32,
                                     -bc_bound, bc_bound),
        "lin_w": jax.random.uniform(k3, (latent_dim, N), jnp.float32,
                                    -bl_bound, bl_bound),
        "lin_b": jax.random.uniform(k4, (latent_dim,), jnp.float32,
                                    -bl_bound, bl_bound),
    }

    batch = 2
    x = jax.random.normal(k5, (batch, embed_dim), jnp.float32)

    # One-time weight preparation (outside the forward / jit hot path).
    # weight_dtype=jnp.bfloat16 is the knob for large-B, HBM/MXU-bound deployments.
    fused = prepare_encoder_params(params, cfg, weight_dtype=jnp.float32)

    fwd = jax.jit(encoder_2d_forward, static_argnames=("latent_dim", "block_b"))
    out = fwd(x, fused, latent_dim=latent_dim)
    out = jax.block_until_ready(out)

    ref = encoder_2d_reference(x, params, cfg)
    assert out.shape == (batch, latent_dim)
    # Tolerance allows for possible bf16 MXU passes at DEFAULT matmul precision on
    # one side; a layout/semantics bug would produce errors ~100x larger than this.
    if not jnp.allclose(out, ref, atol=5e-3, rtol=5e-3):
        raise AssertionError("Pallas kernel does not match reference")

    print("KERNEL_OK")
</pallas_src>

<mosaic_0001>
module attributes {stable_mosaic.version = 11 : i64} {
  func.func @_encoder2d_kernel(%arg0: i32, %arg1: memref<8x256xf32, #tpu.memory_space<vmem>>, %arg2: memref<256x512xf32, #tpu.memory_space<vmem>>, %arg3: memref<1x512xf32, #tpu.memory_space<vmem>>, %arg4: memref<512x128xf32, #tpu.memory_space<vmem>>, %arg5: memref<1x128xf32, #tpu.memory_space<vmem>>, %arg6: memref<8x128xf32, #tpu.memory_space<vmem>>) attributes {dimension_semantics = [#tpu.dimension_semantics<parallel>], iteration_bounds = array<i64: 1>, scalar_prefetch = 0 : i64, scratch_operands = 0 : i64, tpu.core_type = #tpu.core_type<tc>, window_params = [{transform_indices = @transform_0, window_bounds = array<i64: 8, 256>}, {pipeline_mode = #tpu.pipeline_mode<synchronous>, transform_indices = @transform_1, window_bounds = array<i64: 256, 512>}, {pipeline_mode = #tpu.pipeline_mode<synchronous>, transform_indices = @transform_2, window_bounds = array<i64: 1, 512>}, {pipeline_mode = #tpu.pipeline_mode<synchronous>, transform_indices = @transform_3, window_bounds = array<i64: 512, 128>}, {pipeline_mode = #tpu.pipeline_mode<synchronous>, transform_indices = @transform_4, window_bounds = array<i64: 1, 128>}, {transform_indices = @transform_5, window_bounds = array<i64: 8, 128>}]} {
    %c0 = arith.constant 0 : index
    %c0_0 = arith.constant 0 : index
    %0 = vector.load %arg1[%c0, %c0_0] : memref<8x256xf32, #tpu.memory_space<vmem>>, vector<8x256xf32>
    %c0_1 = arith.constant 0 : index
    %c0_2 = arith.constant 0 : index
    %1 = vector.load %arg2[%c0_1, %c0_2] : memref<256x512xf32, #tpu.memory_space<vmem>>, vector<256x512xf32>
    %cst = arith.constant dense<0.000000e+00> : vector<8x512xf32>
    %2 = tpu.matmul %0, %1, %cst {dimension_numbers = #tpu.dot_dimension_numbers<[1], [0], [0], [1], [0, 0, 1, 1], [], []>} : vector<8x256xf32>, vector<256x512xf32>, vector<8x512xf32> -> vector<8x512xf32>
    %c0_3 = arith.constant 0 : index
    %c0_4 = arith.constant 0 : index
    %3 = vector.load %arg3[%c0_3, %c0_4] : memref<1x512xf32, #tpu.memory_space<vmem>>, vector<1x512xf32>
    %4 = vector.broadcast %3 : vector<1x512xf32> to vector<8x512xf32>
    %5 = arith.addf %2, %4 : vector<8x512xf32>
    %cst_5 = arith.constant 0.000000e+00 : f32
    %6 = vector.broadcast %cst_5 : f32 to vector<8x512xf32>
    %7 = arith.maximumf %5, %6 : vector<8x512xf32>
    %c0_6 = arith.constant 0 : index
    %c0_7 = arith.constant 0 : index
    %8 = vector.load %arg4[%c0_6, %c0_7] : memref<512x128xf32, #tpu.memory_space<vmem>>, vector<512x128xf32>
    %cst_8 = arith.constant dense<0.000000e+00> : vector<8x128xf32>
    %9 = tpu.matmul %7, %8, %cst_8 {dimension_numbers = #tpu.dot_dimension_numbers<[1], [0], [0], [1], [0, 0, 1, 1], [], []>} : vector<8x512xf32>, vector<512x128xf32>, vector<8x128xf32> -> vector<8x128xf32>
    %c0_9 = arith.constant 0 : index
    %c0_10 = arith.constant 0 : index
    %10 = vector.load %arg5[%c0_9, %c0_10] : memref<1x128xf32, #tpu.memory_space<vmem>>, vector<1x128xf32>
    %11 = vector.broadcast %10 : vector<1x128xf32> to vector<8x128xf32>
    %12 = arith.addf %9, %11 : vector<8x128xf32>
    %c0_11 = arith.constant 0 : index
    %c0_12 = arith.constant 0 : index
    %13 = vector.load %arg6[%c0_11, %c0_12] : memref<8x128xf32, #tpu.memory_space<vmem>>, vector<8x128xf32>
    tpu.vector_store %arg6[%c0_11, %c0_12], %12 {strides = array<i32>} : memref<8x128xf32, #tpu.memory_space<vmem>>, vector<8x128xf32>,
    return
  }
  func.func @transform_0(%arg0: i32) -> (i32, i32) {
    %c0_i32 = arith.constant 0 : i32
    %c0_i32_0 = arith.constant 0 : i32
    return %arg0, %c0_i32 : i32, i32
  }
  func.func @transform_1(%arg0: i32) -> (i32, i32) {
    %c0_i32 = arith.constant 0 : i32
    %c0_i32_0 = arith.constant 0 : i32
    %c0_i32_1 = arith.constant 0 : i32
    return %c0_i32, %c0_i32_0 : i32, i32
  }
  func.func @transform_2(%arg0: i32) -> (i32, i32) {
    %c0_i32 = arith.constant 0 : i32
    %c0_i32_0 = arith.constant 0 : i32
    %c0_i32_1 = arith.constant 0 : i32
    return %c0_i32, %c0_i32_0 : i32, i32
  }
  func.func @transform_3(%arg0: i32) -> (i32, i32) {
    %c0_i32 = arith.constant 0 : i32
    %c0_i32_0 = arith.constant 0 : i32
    %c0_i32_1 = arith.constant 0 : i32
    return %c0_i32, %c0_i32_0 : i32, i32
  }
  func.func @transform_4(%arg0: i32) -> (i32, i32) {
    %c0_i32 = arith.constant 0 : i32
    %c0_i32_0 = arith.constant 0 : i32
    %c0_i32_1 = arith.constant 0 : i32
    return %c0_i32, %c0_i32_0 : i32, i32
  }
  func.func @transform_5(%arg0: i32) -> (i32, i32) {
    %c0_i32 = arith.constant 0 : i32
    %c0_i32_0 = arith.constant 0 : i32
    return %arg0, %c0_i32 : i32, i32
  }
}

</mosaic_0001>

<llo_original>
// kernel: encoder_2d_forward.1
$region0: #{encoder_2d_forward.1}
  #allocation0 [shape = 'u32[]', space=smem, size = 0x4, offset = 0x4, fixed_abs, tag = 'smem constant byte address 0x4 - core index']
  #allocation1 [shape = 'u32[144,128]{1,0:T(1,128)}', space=vmem, size = 0x12000, scoped, tag = 'internal scratch']
  %s0 = inlined_call_operand.vmem [shape: f32[8,256], index: 0, kind: input, shape index: {}]
  %s1 = inlined_call_operand.hbm [shape: f32[256,512], index: 1, kind: input, shape index: {}]
  %s2 = inlined_call_operand.vmem [shape: f32[1,512], index: 2, kind: input, shape index: {}]
  %s3 = inlined_call_operand.hbm [shape: f32[512,128], index: 3, kind: input, shape index: {}]
  %s4 = inlined_call_operand.vmem [shape: f32[1,128], index: 4, kind: input, shape index: {}]
  %s5 = inlined_call_operand.vmem [shape: f32[8,128], index: 5, kind: output, shape index: {}]
  %s6 = sld [smem:[#allocation0]]
  $region38: #{encoder_2d_forward.1} parent=0
    _
  %s8 = ssub.s32 1, %s6
  %s9 = scalar_select 0, %s8, %s6
  $region1: #{encoder_2d_forward.1} parent=0
    #allocation2 [shape = 'u8[524288]{0}', space=vmem, size = 0x80000, scoped, tag = 'input window, operand 1, single buffered']
    #allocation3 [shape = 's32[1]{0}', space=sflag, size = 0x4, scoped, tag = 'scoped memory for encoder_2d_forward.1']
    #allocation4 [shape = 'u8[262144]{0}', space=vmem, size = 0x40000, scoped, tag = 'input window, operand 3, single buffered']
    #allocation5 [shape = 's32[1]{0}', space=sflag, size = 0x4, scoped, tag = 'scoped memory for encoder_2d_forward.1']
    %10 = vsyncpa [#allocation3], 0
    %11 = vsyncpa [#allocation5], 0
    // Predicated region
    $region2: #{encoder_2d_forward.1} parent=1 // pred_check
      _
    $region3: #{encoder_2d_forward.1} parent=1 // pred_check_branch
      %13 = sbr.rel (0) target = $region5
    $region4: #{encoder_2d_forward.1} parent=1 // pred_region
      _
    $region5: #{encoder_2d_forward.1} parent=1 // pred_fallthru
      _
    // Predicated region
    $region6: #{encoder_2d_forward.1} parent=1 // pred_check
      _
    $region7: #{encoder_2d_forward.1} parent=1 // pred_check_branch
      %15 = sbr.rel (0) target = $region9
    $region8: #{encoder_2d_forward.1} parent=1 // pred_region
      %s17 = ssub.s32 16384, 16384
      %18 = vsyncadd [#allocation3], %s17
      %s19 = sshll.u32 [#allocation2], 4
      %s20 = int_to_ptr.vmem [resolvable:$true] %s19
      %25 = dma.hbm_to_vmem [thread:$0]  %s1, 16384, %s20, [#allocation3], 512, 512, 32
    $region9: #{encoder_2d_forward.1} parent=1 // pred_fallthru
      _
    // Predicated region
    $region10: #{encoder_2d_forward.1} parent=1 // pred_check
      _
    $region11: #{encoder_2d_forward.1} parent=1 // pred_check_branch
      %27 = sbr.rel (0) target = $region13
    $region12: #{encoder_2d_forward.1} parent=1 // pred_region
      _
    $region13: #{encoder_2d_forward.1} parent=1 // pred_fallthru
      _
    // Predicated region
    $region14: #{encoder_2d_forward.1} parent=1 // pred_check
      _
    $region15: #{encoder_2d_forward.1} parent=1 // pred_check_branch
      %29 = sbr.rel (0) target = $region17
    $region16: #{encoder_2d_forward.1} parent=1 // pred_region
      %s31 = ssub.s32 8192, 8192
      %32 = vsyncadd [#allocation5], %s31
      %s33 = sshll.u32 [#allocation4], 4
      %s34 = int_to_ptr.vmem [resolvable:$true] %s33
      %39 = dma.hbm_to_vmem [thread:$0]  %s3, 8192, %s34, [#allocation5], 128, 128, 8
    $region17: #{encoder_2d_forward.1} parent=1 // pred_fallthru
      _
    // Predicated region
    $region18: #{encoder_2d_forward.1} parent=1 // pred_check
      _
    $region19: #{encoder_2d_forward.1} parent=1 // pred_check_branch
      %41 = sbr.rel (0) target = $region21
    $region20: #{encoder_2d_forward.1} parent=1 // pred_region
      _
    $region21: #{encoder_2d_forward.1} parent=1 // pred_fallthru
      _
    // Predicated region
    $region22: #{encoder_2d_forward.1} parent=1 // pred_check
      _
    $region23: #{encoder_2d_forward.1} parent=1 // pred_check_branch
      %43 = sbr.rel (0) target = $region25
    $region24: #{encoder_2d_forward.1} parent=1 // pred_region
      %44 = dma.done [#allocation3], 16384
    $region25: #{encoder_2d_forward.1} parent=1 // pred_fallthru
      _
    // Predicated region
    $region26: #{encoder_2d_forward.1} parent=1 // pred_check
      _
    $region27: #{encoder_2d_forward.1} parent=1 // pred_check_branch
      %46 = sbr.rel (0) target = $region29
    $region28: #{encoder_2d_forward.1} parent=1 // pred_region
      %47 = dma.done [#allocation5], 8192
    $region29: #{encoder_2d_forward.1} parent=1 // pred_fallthru
      _
    %v48 = vld [vmem:[%s0] sm:$0xff]
    %v49 = vld [vmem:[%s0 + $0x8] sm:$0xff]
    %v50 = vld [vmem:[#allocation2] sm:$0xff]
    %v51 = vld [vmem:[#allocation2 + $0x8] sm:$0xff]
    %v52 = vld [vmem:[#allocation2 + $0x10] sm:$0xff]
    %v53 = vld [vmem:[#allocation2 + $0x18] sm:$0xff]
    %v54 = vld [vmem:[#allocation2 + $0x20] sm:$0xff]
    %v55 = vld [vmem:[#allocation2 + $0x28] sm:$0xff]
    %v56 = vld [vmem:[#allocation2 + $0x30] sm:$0xff]
    %v57 = vld [vmem:[#allocation2 + $0x38] sm:$0xff]
    %v58 = vld [vmem:[#allocation2 + $0x40] sm:$0xff]
    %v59 = vld [vmem:[#allocation2 + $0x48] sm:$0xff]
    %v60 = vld [vmem:[#allocation2 + $0x50] sm:$0xff]
    %v61 = vld [vmem:[#allocation2 + $0x58] sm:$0xff]
    %v62 = vld [vmem:[#allocation2 + $0x60] sm:$0xff]
    %v63 = vld [vmem:[#allocation2 + $0x68] sm:$0xff]
    %v64 = vld [vmem:[#allocation2 + $0x70] sm:$0xff]
    %v65 = vld [vmem:[#allocation2 + $0x78] sm:$0xff]
    %v66 = vld [vmem:[#allocation2 + $0x80] sm:$0xff]
    %v67 = vld [vmem:[#allocation2 + $0x88] sm:$0xff]
    %v68 = vld [vmem:[#allocation2 + $0x90] sm:$0xff]
    %v69 = vld [vmem:[#allocation2 + $0x98] sm:$0xff]
    %v70 = vld [vmem:[#allocation2 + $0xa0] sm:$0xff]
    %v71 = vld [vmem:[#allocation2 + $0xa8] sm:$0xff]
    %v72 = vld [vmem:[#allocation2 + $0xb0] sm:$0xff]
    %v73 = vld [vmem:[#allocation2 + $0xb8] sm:$0xff]
    %v74 = vld [vmem:[#allocation2 + $0xc0] sm:$0xff]
    %v75 = vld [vmem:[#allocation2 + $0xc8] sm:$0xff]
    %v76 = vld [vmem:[#allocation2 + $0xd0] sm:$0xff]
    %v77 = vld [vmem:[#allocation2 + $0xd8] sm:$0xff]
    %v78 = vld [vmem:[#allocation2 + $0xe0] sm:$0xff]
    %v79 = vld [vmem:[#allocation2 + $0xe8] sm:$0xff]
    %v80 = vld [vmem:[#allocation2 + $0xf0] sm:$0xff]
    %v81 = vld [vmem:[#allocation2 + $0xf8] sm:$0xff]
    %v82 = vld [vmem:[#allocation2 + $0x100] sm:$0xff]
    %v83 = vld [vmem:[#allocation2 + $0x108] sm:$0xff]
    %v84 = vld [vmem:[#allocation2 + $0x110] sm:$0xff]
    %v85 = vld [vmem:[#allocation2 + $0x118] sm:$0xff]
    %v86 = vld [vmem:[#allocation2 + $0x120] sm:$0xff]
    %v87 = vld [vmem:[#allocation2 + $0x128] sm:$0xff]
    %v88 = vld [vmem:[#allocation2 + $0x130] sm:$0xff]
    %v89 = vld [vmem:[#allocation2 + $0x138] sm:$0xff]
    %v90 = vld [vmem:[#allocation2 + $0x140] sm:$0xff]
    %v91 = vld [vmem:[#allocation2 + $0x148] sm:$0xff]
    %v92 = vld [vmem:[#allocation2 + $0x150] sm:$0xff]
    %v93 = vld [vmem:[#allocation2 + $0x158] sm:$0xff]
    %v94 = vld [vmem:[#allocation2 + $0x160] sm:$0xff]
    %v95 = vld [vmem:[#allocation2 + $0x168] sm:$0xff]
    %v96 = vld [vmem:[#allocation2 + $0x170] sm:$0xff]
    %v97 = vld [vmem:[#allocation2 + $0x178] sm:$0xff]
    %v98 = vld [vmem:[#allocation2 + $0x180] sm:$0xff]
    %v99 = vld [vmem:[#allocation2 + $0x188] sm:$0xff]
    %v100 = vld [vmem:[#allocation2 + $0x190] sm:$0xff]
    %v101 = vld [vmem:[#allocation2 + $0x198] sm:$0xff]
    %v102 = vld [vmem:[#allocation2 + $0x1a0] sm:$0xff]
    %v103 = vld [vmem:[#allocation2 + $0x1a8] sm:$0xff]
    %v104 = vld [vmem:[#allocation2 + $0x1b0] sm:$0xff]
    %v105 = vld [vmem:[#allocation2 + $0x1b8] sm:$0xff]
    %v106 = vld [vmem:[#allocation2 + $0x1c0] sm:$0xff]
    %v107 = vld [vmem:[#allocation2 + $0x1c8] sm:$0xff]
    %v108 = vld [vmem:[#allocation2 + $0x1d0] sm:$0xff]
    %v109 = vld [vmem:[#allocation2 + $0x1d8] sm:$0xff]
    %v110 = vld [vmem:[#allocation2 + $0x1e0] sm:$0xff]
    %v111 = vld [vmem:[#allocation2 + $0x1e8] sm:$0xff]
    %v112 = vld [vmem:[#allocation2 + $0x1f0] sm:$0xff]
    %v113 = vld [vmem:[#allocation2 + $0x1f8] sm:$0xff]
    %v114 = vld [vmem:[#allocation2 + $0x200] sm:$0xff]
    %v115 = vld [vmem:[#allocation2 + $0x208] sm:$0xff]
    %v116 = vld [vmem:[#allocation2 + $0x210] sm:$0xff]
    %v117 = vld [vmem:[#allocation2 + $0x218] sm:$0xff]
    %v118 = vld [vmem:[#allocation2 + $0x220] sm:$0xff]
    %v119 = vld [vmem:[#allocation2 + $0x228] sm:$0xff]
    %v120 = vld [vmem:[#allocation2 + $0x230] sm:$0xff]
    %v121 = vld [vmem:[#allocation2 + $0x238] sm:$0xff]
    %v122 = vld [vmem:[#allocation2 + $0x240] sm:$0xff]
    %v123 = vld [vmem:[#allocation2 + $0x248] sm:$0xff]
    %v124 = vld [vmem:[#allocation2 + $0x250] sm:$0xff]
    %v125 = vld [vmem:[#allocation2 + $0x258] sm:$0xff]
    %v126 = vld [vmem:[#allocation2 + $0x260] sm:$0xff]
    %v127 = vld [vmem:[#allocation2 + $0x268] sm:$0xff]
    %v128 = vld [vmem:[#allocation2 + $0x270] sm:$0xff]
    %v129 = vld [vmem:[#allocation2 + $0x278] sm:$0xff]
    %v130 = vld [vmem:[#allocation2 + $0x280] sm:$0xff]
    %v131 = vld [vmem:[#allocation2 + $0x288] sm:$0xff]
    %v132 = vld [vmem:[#allocation2 + $0x290] sm:$0xff]
    %v133 = vld [vmem:[#allocation2 + $0x298] sm:$0xff]
    %v134 = vld [vmem:[#allocation2 + $0x2a0] sm:$0xff]
    %v135 = vld [vmem:[#allocation2 + $0x2a8] sm:$0xff]
    %v136 = vld [vmem:[#allocation2 + $0x2b0] sm:$0xff]
    %v137 = vld [vmem:[#allocation2 + $0x2b8] sm:$0xff]
    %v138 = vld [vmem:[#allocation2 + $0x2c0] sm:$0xff]
    %v139 = vld [vmem:[#allocation2 + $0x2c8] sm:$0xff]
    %v140 = vld [vmem:[#allocation2 + $0x2d0] sm:$0xff]
    %v141 = vld [vmem:[#allocation2 + $0x2d8] sm:$0xff]
    %v142 = vld [vmem:[#allocation2 + $0x2e0] sm:$0xff]
    %v143 = vld [vmem:[#allocation2 + $0x2e8] sm:$0xff]
    %v144 = vld [vmem:[#allocation2 + $0x2f0] sm:$0xff]
    %v145 = vld [vmem:[#allocation2 + $0x2f8] sm:$0xff]
    %v146 = vld [vmem:[#allocation2 + $0x300] sm:$0xff]
    %v147 = vld [vmem:[#allocation2 + $0x308] sm:$0xff]
    %v148 = vld [vmem:[#allocation2 + $0x310] sm:$0xff]
    %v149 = vld [vmem:[#allocation2 + $0x318] sm:$0xff]
    %v150 = vld [vmem:[#allocation2 + $0x320] sm:$0xff]
    %v151 = vld [vmem:[#allocation2 + $0x328] sm:$0xff]
    %v152 = vld [vmem:[#allocation2 + $0x330] sm:$0xff]
    %v153 = vld [vmem:[#allocation2 + $0x338] sm:$0xff]
    %v154 = vld [vmem:[#allocation2 + $0x340] sm:$0xff]
    %v155 = vld [vmem:[#allocation2 + $0x348] sm:$0xff]
    %v156 = vld [vmem:[#allocation2 + $0x350] sm:$0xff]
    %v157 = vld [vmem:[#allocation2 + $0x358] sm:$0xff]
    %v158 = vld [vmem:[#allocation2 + $0x360] sm:$0xff]
    %v159 = vld [vmem:[#allocation2 + $0x368] sm:$0xff]
    %v160 = vld [vmem:[#allocation2 + $0x370] sm:$0xff]
    %v161 = vld [vmem:[#allocation2 + $0x378] sm:$0xff]
    %v162 = vld [vmem:[#allocation2 + $0x380] sm:$0xff]
    %v163 = vld [vmem:[#allocation2 + $0x388] sm:$0xff]
    %v164 = vld [vmem:[#allocation2 + $0x390] sm:$0xff]
    %v165 = vld [vmem:[#allocation2 + $0x398] sm:$0xff]
    %v166 = vld [vmem:[#allocation2 + $0x3a0] sm:$0xff]
    %v167 = vld [vmem:[#allocation2 + $0x3a8] sm:$0xff]
    %v168 = vld [vmem:[#allocation2 + $0x3b0] sm:$0xff]
    %v169 = vld [vmem:[#allocation2 + $0x3b8] sm:$0xff]
    %v170 = vld [vmem:[#allocation2 + $0x3c0] sm:$0xff]
    %v171 = vld [vmem:[#allocation2 + $0x3c8] sm:$0xff]
    %v172 = vld [vmem:[#allocation2 + $0x3d0] sm:$0xff]
    %v173 = vld [vmem:[#allocation2 + $0x3d8] sm:$0xff]
    %v174 = vld [vmem:[#allocation2 + $0x3e0] sm:$0xff]
    %v175 = vld [vmem:[#allocation2 + $0x3e8] sm:$0xff]
    %v176 = vld [vmem:[#allocation2 + $0x3f0] sm:$0xff]
    %v177 = vld [vmem:[#allocation2 + $0x3f8] sm:$0xff]
    %v178 = vld [vmem:[%s2] sm:$0xf]
    %v180 = vlaneseq
    %v181 = vshrl.u32 %v180, 7
    %v182 = vsub.s32 0, %v181
    %v183 = vrot.slane %v178, %v182
    %v184 = vlaneseq
    %v185 = vshrl.u32 %v184, 7
    %v186 = vsub.s32 1, %v185
    %v187 = vrot.slane %v178, %v186
    %v188 = vlaneseq
    %v189 = vshrl.u32 %v188, 7
    %v190 = vsub.s32 2, %v189
    %v191 = vrot.slane %v178, %v190
    %v192 = vlaneseq
    %v193 = vshrl.u32 %v192, 7
    %v194 = vsub.s32 3, %v193
    %v195 = vrot.slane %v178, %v194
    %200 = vmatprep.subr.mxu0 %v51
    %201 = vmatpush1.msra.mxu0 %v50
    %202 = vmatprep.subr.mxu0 %v55
    %203 = vmatpush1.msra.mxu0 %v54
    %204 = vmatprep.subr.mxu0 %v59
    %205 = vmatpush1.msra.mxu0 %v58
    %206 = vmatprep.subr.mxu0 %v63
    %207 = vmatpush1.msra.mxu0 %v62
    %208 = vmatprep.subr.mxu0 %v67
    %209 = vmatpush1.msra.mxu0 %v66
    %210 = vmatprep.subr.mxu0 %v71
    %211 = vmatpush1.msra.mxu0 %v70
    %212 = vmatprep.subr.mxu0 %v75
    %213 = vmatpush1.msra.mxu0 %v74
    %214 = vmatprep.subr.mxu0 %v79
    %215 = vmatpush1.msra.mxu0 %v78
    %216 = vmatprep.subr.mxu0 %v83
    %217 = vmatpush1.msra.mxu0 %v82
    %218 = vmatprep.subr.mxu0 %v87
    %219 = vmatpush1.msra.mxu0 %v86
    %220 = vmatprep.subr.mxu0 %v91
    %221 = vmatpush1.msra.mxu0 %v90
    %222 = vmatprep.subr.mxu0 %v95
    %223 = vmatpush1.msra.mxu0 %v94
    %224 = vmatprep.subr.mxu0 %v99
    %225 = vmatpush1.msra.mxu0 %v98
    %226 = vmatprep.subr.mxu0 %v103
    %227 = vmatpush1.msra.mxu0 %v102
    %228 = vmatprep.subr.mxu0 %v107
    %229 = vmatpush1.msra.mxu0 %v106
    %230 = vmatprep.subr.mxu0 %v111
    %231 = vmatpush1.msra.mxu0 %v110
    %232 = vmatprep.subr.mxu0 %v115
    %233 = vmatpush1.msra.mxu0 %v114
    %234 = vmatprep.subr.mxu0 %v119
    %235 = vmatpush1.msra.mxu0 %v118
    %236 = vmatprep.subr.mxu0 %v123
    %237 = vmatpush1.msra.mxu0 %v122
    %238 = vmatprep.subr.mxu0 %v127
    %239 = vmatpush1.msra.mxu0 %v126
    %240 = vmatprep.subr.mxu0 %v131
    %241 = vmatpush1.msra.mxu0 %v130
    %242 = vmatprep.subr.mxu0 %v135
    %243 = vmatpush1.msra.mxu0 %v134
    %244 = vmatprep.subr.mxu0 %v139
    %245 = vmatpush1.msra.mxu0 %v138
    %246 = vmatprep.subr.mxu0 %v143
    %247 = vmatpush1.msra.mxu0 %v142
    %248 = vmatprep.subr.mxu0 %v147
    %249 = vmatpush1.msra.mxu0 %v146
    %250 = vmatprep.subr.mxu0 %v151
    %251 = vmatpush1.msra.mxu0 %v150
    %252 = vmatprep.subr.mxu0 %v155
    %253 = vmatpush1.msra.mxu0 %v154
    %254 = vmatprep.subr.mxu0 %v159
    %255 = vmatpush1.msra.mxu0 %v158
    %256 = vmatprep.subr.mxu0 %v163
    %257 = vmatpush1.msra.mxu0 %v162
    %258 = vmatprep.subr.mxu0 %v167
    %259 = vmatpush1.msra.mxu0 %v166
    %260 = vmatprep.subr.mxu0 %v171
    %261 = vmatpush1.msra.mxu0 %v170
    %262 = vmatprep.subr.mxu0 %v175
    %263 = vmatpush1.msra.mxu0 %v174
    %264 = vmatprep.mubr.f32.mxu0 %v49
    %265 = vmatmul.mubr.f32.gmra.mrb[0].mxu0 %v48
    %v266 = vpop.f32.mrb[0].mxu0
    %v267 = vadd.f32 %v183, %v266
    %v268 = vpop.f32.mrb[0].mxu0
    %v269 = vadd.f32 %v187, %v268
    %270 = vdwg.mxu0
    %271 = vmatprep.subr.mxu0 %v53
    %272 = vmatpush1.msra.mxu0 %v52
    %273 = vmatprep.subr.mxu0 %v57
    %274 = vmatpush1.msra.mxu0 %v56
    %275 = vmatprep.subr.mxu0 %v61
    %276 = vmatpush1.msra.mxu0 %v60
    %277 = vmatprep.subr.mxu0 %v65
    %278 = vmatpush1.msra.mxu0 %v64
    %279 = vmatprep.subr.mxu0 %v69
    %280 = vmatpush1.msra.mxu0 %v68
    %281 = vmatprep.subr.mxu0 %v73
    %282 = vmatpush1.msra.mxu0 %v72
    %283 = vmatprep.subr.mxu0 %v77
    %284 = vmatpush1.msra.mxu0 %v76
    %285 = vmatprep.subr.mxu0 %v81
    %286 = vmatpush1.msra.mxu0 %v80
    %287 = vmatprep.subr.mxu0 %v85
    %288 = vmatpush1.msra.mxu0 %v84
    %289 = vmatprep.subr.mxu0 %v89
    %290 = vmatpush1.msra.mxu0 %v88
    %291 = vmatprep.subr.mxu0 %v93
    %292 = vmatpush1.msra.mxu0 %v92
    %293 = vmatprep.subr.mxu0 %v97
    %294 = vmatpush1.msra.mxu0 %v96
    %295 = vmatprep.subr.mxu0 %v101
    %296 = vmatpush1.msra.mxu0 %v100
    %297 = vmatprep.subr.mxu0 %v105
    %298 = vmatpush1.msra.mxu0 %v104
    %299 = vmatprep.subr.mxu0 %v109
    %300 = vmatpush1.msra.mxu0 %v108
    %301 = vmatprep.subr.mxu0 %v113
    %302 = vmatpush1.msra.mxu0 %v112
    %303 = vmatprep.subr.mxu0 %v117
    %304 = vmatpush1.msra.mxu0 %v116
    %305 = vmatprep.subr.mxu0 %v121
    %306 = vmatpush1.msra.mxu0 %v120
    %307 = vmatprep.subr.mxu0 %v125
    %308 = vmatpush1.msra.mxu0 %v124
    %309 = vmatprep.subr.mxu0 %v129
    %310 = vmatpush1.msra.mxu0 %v128
    %311 = vmatprep.subr.mxu0 %v133
    %312 = vmatpush1.msra.mxu0 %v132
    %313 = vmatprep.subr.mxu0 %v137
    %314 = vmatpush1.msra.mxu0 %v136
    %315 = vmatprep.subr.mxu0 %v141
    %316 = vmatpush1.msra.mxu0 %v140
    %317 = vmatprep.subr.mxu0 %v145
    %318 = vmatpush1.msra.mxu0 %v144
    %319 = vmatprep.subr.mxu0 %v149
    %320 = vmatpush1.msra.mxu0 %v148
    %321 = vmatprep.subr.mxu0 %v153
    %322 = vmatpush1.msra.mxu0 %v152
    %323 = vmatprep.subr.mxu0 %v157
    %324 = vmatpush1.msra.mxu0 %v156
    %325 = vmatprep.subr.mxu0 %v161
    %326 = vmatpush1.msra.mxu0 %v160
    %327 = vmatprep.subr.mxu0 %v165
    %328 = vmatpush1.msra.mxu0 %v164
    %329 = vmatprep.subr.mxu0 %v169
    %330 = vmatpush1.msra.mxu0 %v168
    %331 = vmatprep.subr.mxu0 %v173
    %332 = vmatpush1.msra.mxu0 %v172
    %333 = vmatprep.subr.mxu0 %v177
    %334 = vmatpush1.msra.mxu0 %v176
    %335 = vmatprep.mubr.f32.mxu0 %v49
    %336 = vmatmul.mubr.f32.gmra.mrb[0].mxu0 %v48
    %v337 = vpop.f32.mrb[0].mxu0
    %v338 = vadd.f32 %v191, %v337
    %v339 = vpop.f32.mrb[0].mxu0
    %v340 = vadd.f32 %v195, %v339
    %341 = vdwg.mxu0
    %v342 = vmax.f32 %v267, 0.0
    %v343 = vmax.f32 %v269, 0.0
    %v344 = vmax.f32 %v338, 0.0
    %v345 = vmax.f32 %v340, 0.0
    %v346 = vld [vmem:[#allocation4] sm:$0xff]
    %v347 = vld [vmem:[#allocation4 + $0x8] sm:$0xff]
    %v348 = vld [vmem:[#allocation4 + $0x10] sm:$0xff]
    %v349 = vld [vmem:[#allocation4 + $0x18] sm:$0xff]
    %v350 = vld [vmem:[#allocation4 + $0x20] sm:$0xff]
    %v351 = vld [vmem:[#allocation4 + $0x28] sm:$0xff]
    %v352 = vld [vmem:[#allocation4 + $0x30] sm:$0xff]
    %v353 = vld [vmem:[#allocation4 + $0x38] sm:$0xff]
    %v354 = vld [vmem:[#allocation4 + $0x40] sm:$0xff]
    %v355 = vld [vmem:[#allocation4 + $0x48] sm:$0xff]
    %v356 = vld [vmem:[#allocation4 + $0x50] sm:$0xff]
    %v357 = vld [vmem:[#allocation4 + $0x58] sm:$0xff]
    %v358 = vld [vmem:[#allocation4 + $0x60] sm:$0xff]
    %v359 = vld [vmem:[#allocation4 + $0x68] sm:$0xff]
    %v360 = vld [vmem:[#allocation4 + $0x70] sm:$0xff]
    %v361 = vld [vmem:[#allocation4 + $0x78] sm:$0xff]
    %v362 = vld [vmem:[#allocation4 + $0x80] sm:$0xff]
    %v363 = vld [vmem:[#allocation4 + $0x88] sm:$0xff]
    %v364 = vld [vmem:[#allocation4 + $0x90] sm:$0xff]
    %v365 = vld [vmem:[#allocation4 + $0x98] sm:$0xff]
    %v366 = vld [vmem:[#allocation4 + $0xa0] sm:$0xff]
    %v367 = vld [vmem:[#allocation4 + $0xa8] sm:$0xff]
    %v368 = vld [vmem:[#allocation4 + $0xb0] sm:$0xff]
    %v369 = vld [vmem:[#allocation4 + $0xb8] sm:$0xff]
    %v370 = vld [vmem:[#allocation4 + $0xc0] sm:$0xff]
    %v371 = vld [vmem:[#allocation4 + $0xc8] sm:$0xff]
    %v372 = vld [vmem:[#allocation4 + $0xd0] sm:$0xff]
    %v373 = vld [vmem:[#allocation4 + $0xd8] sm:$0xff]
    %v374 = vld [vmem:[#allocation4 + $0xe0] sm:$0xff]
    %v375 = vld [vmem:[#allocation4 + $0xe8] sm:$0xff]
    %v376 = vld [vmem:[#allocation4 + $0xf0] sm:$0xff]
    %v377 = vld [vmem:[#allocation4 + $0xf8] sm:$0xff]
    %v378 = vld [vmem:[#allocation4 + $0x100] sm:$0xff]
    %v379 = vld [vmem:[#allocation4 + $0x108] sm:$0xff]
    %v380 = vld [vmem:[#allocation4 + $0x110] sm:$0xff]
    %v381 = vld [vmem:[#allocation4 + $0x118] sm:$0xff]
    %v382 = vld [vmem:[#allocation4 + $0x120] sm:$0xff]
    %v383 = vld [vmem:[#allocation4 + $0x128] sm:$0xff]
    %v384 = vld [vmem:[#allocation4 + $0x130] sm:$0xff]
    %v385 = vld [vmem:[#allocation4 + $0x138] sm:$0xff]
    %v386 = vld [vmem:[#allocation4 + $0x140] sm:$0xff]
    %v387 = vld [vmem:[#allocation4 + $0x148] sm:$0xff]
    %v388 = vld [vmem:[#allocation4 + $0x150] sm:$0xff]
    %v389 = vld [vmem:[#allocation4 + $0x158] sm:$0xff]
    %v390 = vld [vmem:[#allocation4 + $0x160] sm:$0xff]
    %v391 = vld [vmem:[#allocation4 + $0x168] sm:$0xff]
    %v392 = vld [vmem:[#allocation4 + $0x170] sm:$0xff]
    %v393 = vld [vmem:[#allocation4 + $0x178] sm:$0xff]
    %v394 = vld [vmem:[#allocation4 + $0x180] sm:$0xff]
    %v395 = vld [vmem:[#allocation4 + $0x188] sm:$0xff]
    %v396 = vld [vmem:[#allocation4 + $0x190] sm:$0xff]
    %v397 = vld [vmem:[#allocation4 + $0x198] sm:$0xff]
    %v398 = vld [vmem:[#allocation4 + $0x1a0] sm:$0xff]
    %v399 = vld [vmem:[#allocation4 + $0x1a8] sm:$0xff]
    %v400 = vld [vmem:[#allocation4 + $0x1b0] sm:$0xff]
    %v401 = vld [vmem:[#allocation4 + $0x1b8] sm:$0xff]
    %v402 = vld [vmem:[#allocation4 + $0x1c0] sm:$0xff]
    %v403 = vld [vmem:[#allocation4 + $0x1c8] sm:$0xff]
    %v404 = vld [vmem:[#allocation4 + $0x1d0] sm:$0xff]
    %v405 = vld [vmem:[#allocation4 + $0x1d8] sm:$0xff]
    %v406 = vld [vmem:[#allocation4 + $0x1e0] sm:$0xff]
    %v407 = vld [vmem:[#allocation4 + $0x1e8] sm:$0xff]
    %v408 = vld [vmem:[#allocation4 + $0x1f0] sm:$0xff]
    %v409 = vld [vmem:[#allocation4 + $0x1f8] sm:$0xff]
    %v410 = vld [vmem:[%s4] sm:$0x1]
    %v412 = vlaneseq
    %v413 = vshrl.u32 %v412, 7
    %v414 = vsub.s32 0, %v413
    %v415 = vrot.slane %v410, %v414
    %417 = vmatprep.subr.mxu0 0.0
    %418 = vmatpush1.msra.mxu0 %v346
    %419 = vmatprep.subr.mxu0 0.0
    %420 = vmatpush1.msra.mxu0 %v347
    %421 = vmatprep.subr.mxu0 0.0
    %422 = vmatpush1.msra.mxu0 %v348
    %423 = vmatprep.subr.mxu0 0.0
    %424 = vmatpush1.msra.mxu0 %v349
    %425 = vmatprep.subr.mxu0 0.0
    %426 = vmatpush1.msra.mxu0 %v350
    %427 = vmatprep.subr.mxu0 0.0
    %428 = vmatpush1.msra.mxu0 %v351
    %429 = vmatprep.subr.mxu0 0.0
    %430 = vmatpush1.msra.mxu0 %v352
    %431 = vmatprep.subr.mxu0 0.0
    %432 = vmatpush1.msra.mxu0 %v353
    %433 = vmatprep.subr.mxu0 0.0
    %434 = vmatpush1.msra.mxu0 %v354
    %435 = vmatprep.subr.mxu0 0.0
    %436 = vmatpush1.msra.mxu0 %v355
    %437 = vmatprep.subr.mxu0 0.0
    %438 = vmatpush1.msra.mxu0 %v356
    %439 = vmatprep.subr.mxu0 0.0
    %440 = vmatpush1.msra.mxu0 %v357
    %441 = vmatprep.subr.mxu0 0.0
    %442 = vmatpush1.msra.mxu0 %v358
    %443 = vmatprep.subr.mxu0 0.0
    %444 = vmatpush1.msra.mxu0 %v359
    %445 = vmatprep.subr.mxu0 0.0
    %446 = vmatpush1.msra.mxu0 %v360
    %447 = vmatprep.subr.mxu0 0.0
    %448 = vmatpush1.msra.mxu0 %v361
    %449 = vmatprep.subr.mxu0 0.0
    %450 = vmatpush1.msra.mxu0 %v362
    %451 = vmatprep.subr.mxu0 0.0
    %452 = vmatpush1.msra.mxu0 %v363
    %453 = vmatprep.subr.mxu0 0.0
    %454 = vmatpush1.msra.mxu0 %v364
    %455 = vmatprep.subr.mxu0 0.0
    %456 = vmatpush1.msra.mxu0 %v365
    %457 = vmatprep.subr.mxu0 0.0
    %458 = vmatpush1.msra.mxu0 %v366
    %459 = vmatprep.subr.mxu0 0.0
    %460 = vmatpush1.msra.mxu0 %v367
    %461 = vmatprep.subr.mxu0 0.0
    %462 = vmatpush1.msra.mxu0 %v368
    %463 = vmatprep.subr.mxu0 0.0
    %464 = vmatpush1.msra.mxu0 %v369
    %465 = vmatprep.subr.mxu0 0.0
    %466 = vmatpush1.msra.mxu0 %v370
    %467 = vmatprep.subr.mxu0 0.0
    %468 = vmatpush1.msra.mxu0 %v371
    %469 = vmatprep.subr.mxu0 0.0
    %470 = vmatpush1.msra.mxu0 %v372
    %471 = vmatprep.subr.mxu0 0.0
    %472 = vmatpush1.msra.mxu0 %v373
    %473 = vmatprep.subr.mxu0 0.0
    %474 = vmatpush1.msra.mxu0 %v374
    %475 = vmatprep.subr.mxu0 0.0
    %476 = vmatpush1.msra.mxu0 %v375
    %477 = vmatprep.subr.mxu0 0.0
    %478 = vmatpush1.msra.mxu0 %v376
    %479 = vmatprep.subr.mxu0 0.0
    %480 = vmatpush1.msra.mxu0 %v377
    %481 = vmatprep.mubr.f32.mxu0 %v343
    %482 = vmatmul.mubr.f32.gmra.mrb[0].mxu0 %v342
    %v483 = vpop.f32.mrb[0].mxu0
    %v484 = vadd.f32 %v415, %v483
    %v485 = vpop.f32.mrb[0].mxu0
    %486 = vdwg.mxu0
    %487 = vmatprep.subr.mxu0 0.0
    %488 = vmatpush1.msra.mxu0 %v378
    %489 = vmatprep.subr.mxu0 0.0
    %490 = vmatpush1.msra.mxu0 %v379
    %491 = vmatprep.subr.mxu0 0.0
    %492 = vmatpush1.msra.mxu0 %v380
    %493 = vmatprep.subr.mxu0 0.0
    %494 = vmatpush1.msra.mxu0 %v381
    %495 = vmatprep.subr.mxu0 0.0
    %496 = vmatpush1.msra.mxu0 %v382
    %497 = vmatprep.subr.mxu0 0.0
    %498 = vmatpush1.msra.mxu0 %v383
    %499 = vmatprep.subr.mxu0 0.0
    %500 = vmatpush1.msra.mxu0 %v384
    %501 = vmatprep.subr.mxu0 0.0
    %502 = vmatpush1.msra.mxu0 %v385
    %503 = vmatprep.subr.mxu0 0.0
    %504 = vmatpush1.msra.mxu0 %v386
    %505 = vmatprep.subr.mxu0 0.0
    %506 = vmatpush1.msra.mxu0 %v387
    %507 = vmatprep.subr.mxu0 0.0
    %508 = vmatpush1.msra.mxu0 %v388
    %509 = vmatprep.subr.mxu0 0.0
    %510 = vmatpush1.msra.mxu0 %v389
    %511 = vmatprep.subr.mxu0 0.0
    %512 = vmatpush1.msra.mxu0 %v390
    %513 = vmatprep.subr.mxu0 0.0
    %514 = vmatpush1.msra.mxu0 %v391
    %515 = vmatprep.subr.mxu0 0.0
    %516 = vmatpush1.msra.mxu0 %v392
    %517 = vmatprep.subr.mxu0 0.0
    %518 = vmatpush1.msra.mxu0 %v393
    %519 = vmatprep.subr.mxu0 0.0
    %520 = vmatpush1.msra.mxu0 %v394
    %521 = vmatprep.subr.mxu0 0.0
    %522 = vmatpush1.msra.mxu0 %v395
    %523 = vmatprep.subr.mxu0 0.0
    %524 = vmatpush1.msra.mxu0 %v396
    %525 = vmatprep.subr.mxu0 0.0
    %526 = vmatpush1.msra.mxu0 %v397
    %527 = vmatprep.subr.mxu0 0.0
    %528 = vmatpush1.msra.mxu0 %v398
    %529 = vmatprep.subr.mxu0 0.0
    %530 = vmatpush1.msra.mxu0 %v399
    %531 = vmatprep.subr.mxu0 0.0
    %532 = vmatpush1.msra.mxu0 %v400
    %533 = vmatprep.subr.mxu0 0.0
    %534 = vmatpush1.msra.mxu0 %v401
    %535 = vmatprep.subr.mxu0 0.0
    %536 = vmatpush1.msra.mxu0 %v402
    %537 = vmatprep.subr.mxu0 0.0
    %538 = vmatpush1.msra.mxu0 %v403
    %539 = vmatprep.subr.mxu0 0.0
    %540 = vmatpush1.msra.mxu0 %v404
    %541 = vmatprep.subr.mxu0 0.0
    %542 = vmatpush1.msra.mxu0 %v405
    %543 = vmatprep.subr.mxu0 0.0
    %544 = vmatpush1.msra.mxu0 %v406
    %545 = vmatprep.subr.mxu0 0.0
    %546 = vmatpush1.msra.mxu0 %v407
    %547 = vmatprep.subr.mxu0 0.0
    %548 = vmatpush1.msra.mxu0 %v408
    %549 = vmatprep.subr.mxu0 0.0
    %550 = vmatpush1.msra.mxu0 %v409
    %551 = vmatprep.mubr.f32.mxu0 %v345
    %552 = vmatmul.mubr.f32.gmra.mrb[0].mxu0 %v344
    %v553 = vpop.f32.mrb[0].mxu0
    %v554 = vadd.f32 %v484, %v553
    %v555 = vpop.f32.mrb[0].mxu0
    %556 = vdwg.mxu0
    %557 = vst [vmem:[%s5] sm:$0xff] %v554
    // Predicated region
    $region30: #{encoder_2d_forward.1} parent=1 // pred_check
      _
    $region31: #{encoder_2d_forward.1} parent=1 // pred_check_branch
      %559 = sbr.rel (0) target = $region33
    $region32: #{encoder_2d_forward.1} parent=1 // pred_region
      _
    $region33: #{encoder_2d_forward.1} parent=1 // pred_fallthru
      _
    // Predicated region
    $region34: #{encoder_2d_forward.1} parent=1 // pred_check
      _
    $region35: #{encoder_2d_forward.1} parent=1 // pred_check_branch
      %561 = sbr.rel (0) target = $region37
    $region36: #{encoder_2d_forward.1} parent=1 // pred_region
      _
    $region37: #{encoder_2d_forward.1} parent=1 // pred_fallthru
      _
    %562 = vsyncpa [#allocation3], 1
    %563 = vsyncpa [#allocation5], 1

</llo_original>
